<compile_context>
chip_gen: v7x
topology: tpu7x:2x2x1
jax: 0.10.0
libtpu: 0.0.40
codegen_flags: <defaults>
</compile_context>

<pallas_src>
import functools

import jax
import jax.numpy as jnp
from jax.experimental import pallas as pl
from jax.experimental.pallas import tpu as pltpu

_LANE = 128      # lane width (last-dim tiling unit)
_SUBLANE = 8     # f32 sublane count (second-to-last-dim tiling unit)


def _round_up(x, m):
    return ((x + m - 1) // m) * m


def _fused_mlp_kernel(x_ref, *refs, n_hidden, negative_slope):
    """Fused MLP over one batch tile.

    refs = (W1, b1, ..., Wn, bn, Wout, bout, out_ref, feat_ref)
    x_ref:   [TB, D0p] f32 (padded, lane-dense)
    W_i:     [D(i-1)p, Dip] bf16   b_i: [1, Dip] f32
    out_ref: [TB, Doutp]           feat_ref: [TB, Dlastp]
    """
    n_weights = n_hidden + 1
    wb_refs = refs[: 2 * n_weights]
    out_ref = refs[2 * n_weights]
    feat_ref = refs[2 * n_weights + 1]

    h = x_ref[...]                                     # f32 activations
    for li in range(n_hidden):
        w = wb_refs[2 * li][...]                       # bf16 weight (MXU-native)
        b = wb_refs[2 * li + 1][...]                   # f32 bias
        y = jnp.dot(h.astype(w.dtype), w, preferred_element_type=jnp.float32) + b
        # LeakyReLU(0.01) as mul + max (exact for 0 < slope < 1), f32 on the VPU.
        h = jnp.maximum(y, negative_slope * y)
        # TODO(synk): training-mode Dropout / use_bn=True BatchNorm1d not implemented
        # (identity / absent in the default eval-mode forward).

    feat_ref[...] = h.astype(feat_ref.dtype)

    w_out = wb_refs[2 * n_hidden][...]
    b_out = wb_refs[2 * n_hidden + 1][...]
    out = jnp.dot(h.astype(w_out.dtype), w_out,
                  preferred_element_type=jnp.float32) + b_out
    out_ref[...] = out.astype(out_ref.dtype)


def prepare_params(params, compute_dtype=jnp.bfloat16):
    """One-time prep: zero-pad every weight/bias to lane-dense multiples of 128
    and cast weights to bf16 (MXU-native).  Biases stay f32 (VPU bias add).
    Returns (weights, biases, dims) where dims are the ORIGINAL feature dims."""
    input_dim = params[0][0].shape[0]
    dims = (input_dim,) + tuple(w.shape[1] for (w, _) in params)
    padded = tuple(_round_up(d, _LANE) for d in dims)
    weights, biases = [], []
    for li, (w, b) in enumerate(params):
        din, dout = w.shape
        dpi, dpo = padded[li], padded[li + 1]
        wp = jnp.zeros((dpi, dpo), compute_dtype).at[:din, :dout].set(
            w.astype(compute_dtype))
        bp = jnp.zeros((1, dpo), jnp.float32).at[0, :dout].set(b.astype(jnp.float32))
        weights.append(wp)
        biases.append(bp)
    return tuple(weights), tuple(biases), dims


def fc_classifier2_forward(x, weights, biases, *, dims, negative_slope=0.01,
                           max_batch_tile=1024):
    """Eval-mode FcClassifier2 forward on pre-padded params (see prepare_params).

    x: [B, input_dim] f32.  Returns (out [B, output_dim], feat [B, last_hidden]).
    `dims` must be passed as a static (hashable) tuple of the original dims.
    """
    B, input_dim = x.shape
    n_hidden = len(weights) - 1
    padded = (weights[0].shape[0],) + tuple(w.shape[1] for w in weights)
    assert input_dim == dims[0]

    # Balanced batch tiling: >= 2 grid steps whenever B >= 16 (keeps both v7x
    # TensorCores busy under the "parallel" axis); tiles are sublane-aligned and
    # the batch is never padded to a full max_batch_tile multiple.
    n_tiles = max(-(-B // max_batch_tile), 2) if B >= 2 * _SUBLANE else 1
    tb = _round_up(-(-B // n_tiles), _SUBLANE)
    n_tiles = -(-B // tb)
    Bp = tb * n_tiles
    grid = (n_tiles,)

    if (Bp, input_dim) == (B, padded[0]):
        xp = x
    else:
        xp = jnp.zeros((Bp, padded[0]), x.dtype).at[:B, :input_dim].set(x)

    in_specs = [pl.BlockSpec((tb, padded[0]), lambda i: (i, 0))]
    wb_inputs = []
    weight_bytes = 0
    for li in range(n_hidden + 1):
        w, b = weights[li], biases[li]
        wb_inputs += [w, b]
        weight_bytes += w.size * w.dtype.itemsize + b.size * b.dtype.itemsize
        # Constant index_map -> fetched once; single-buffer to halve weight VMEM.
        in_specs += [
            pl.BlockSpec(tuple(w.shape), lambda i: (0, 0),
                         pipeline_mode=pl.Buffered(1)),
            pl.BlockSpec(tuple(b.shape), lambda i: (0, 0),
                         pipeline_mode=pl.Buffered(1)),
        ]

    out_shapes = (
        jax.ShapeDtypeStruct((Bp, padded[-1]), x.dtype),   # out  (padded)
        jax.ShapeDtypeStruct((Bp, padded[-2]), x.dtype),   # feat (padded)
    )
    out_specs = (
        pl.BlockSpec((tb, padded[-1]), lambda i: (i, 0)),
        pl.BlockSpec((tb, padded[-2]), lambda i: (i, 0)),
    )

    itemsize = jnp.dtype(x.dtype).itemsize
    tile_io_bytes = tb * (padded[0] + padded[-1] + padded[-2]) * itemsize
    vmem_needed = weight_bytes + 2 * tile_io_bytes    # weights 1x, I/O double-buffered
    vmem_limit = int(min(max(2 * vmem_needed, 32 << 20), 64 << 20))
    # TODO(synk): if one padded weight alone exceeds ~40-50 MiB (v7x has 64 MiB/TC),
    # stream that layer's W in chunks (memory_space=pl.ANY + pltpu.emit_pipeline)
    # instead of keeping it fully resident.

    flops = 2 * B * sum(dims[i] * dims[i + 1] for i in range(len(dims) - 1))
    bytes_accessed = int(x.size * itemsize + weight_bytes
                         + B * (dims[-1] + dims[-2]) * itemsize)
    cost = pl.CostEstimate(flops=flops, transcendentals=0,
                           bytes_accessed=bytes_accessed)

    kernel = functools.partial(_fused_mlp_kernel, n_hidden=n_hidden,
                               negative_slope=negative_slope)
    out_p, feat_p = pl.pallas_call(
        kernel,
        out_shape=out_shapes,
        grid=grid,
        in_specs=in_specs,
        out_specs=out_specs,
        compiler_params=pltpu.CompilerParams(
            dimension_semantics=("parallel",),
            vmem_limit_bytes=vmem_limit,
        ),
        cost_estimate=cost,
    )(xp, *wb_inputs)

    # Slice away padding only when it exists (avoids a pure-bandwidth copy).
    out = out_p if (Bp == B and padded[-1] == dims[-1]) else out_p[:B, :dims[-1]]
    feat = feat_p if (Bp == B and padded[-2] == dims[-2]) else feat_p[:B, :dims[-2]]
    return out, feat


def init_fc_classifier2_params(key, input_dim, layers, output_dim):
    """Kaiming-normal (fan_in, leaky_relu) weights, zero biases — mirrors
    FcClassifier2.init_weights().  Weights stored as [in_dim, out_dim]."""
    params = []
    prev_dim = input_dim
    dims = list(layers) + [output_dim]
    for d in dims:
        key, wk = jax.random.split(key)
        std = jnp.sqrt(2.0 / prev_dim)
        w = jax.random.normal(wk, (prev_dim, d), dtype=jnp.float32) * std
        b = jnp.zeros((d,), dtype=jnp.float32)
        params.append((w, b))
        prev_dim = d
    return params


def _reference_forward(x, params, negative_slope=0.01):
    """Pure-JAX reference using the same bf16-matmul / f32-accumulate path."""
    h = x
    for (w, b) in params[:-1]:
        y = jnp.dot(h.astype(jnp.bfloat16), w.astype(jnp.bfloat16),
                    preferred_element_type=jnp.float32) + b
        h = jnp.where(y >= 0.0, y, negative_slope * y)
    w_out, b_out = params[-1]
    out = jnp.dot(h.astype(jnp.bfloat16), w_out.astype(jnp.bfloat16),
                  preferred_element_type=jnp.float32) + b_out
    return out, h


if __name__ == "__main__":
    key = jax.random.PRNGKey(0)
    key, xk = jax.random.split(key)

    # Small, module-consistent shapes (B=16 -> 2 grid steps, exercises megacore path).
    batch = 16
    input_dim = 32
    layers = [64, 32]
    output_dim = 4

    x = jax.random.normal(xk, (batch, input_dim), dtype=jnp.float32)
    params = init_fc_classifier2_params(key, input_dim, layers, output_dim)

    # One-time padding + bf16 cast of the weights (outside the per-call path).
    weights_p, biases_p, dims = prepare_params(params)
    forward = jax.jit(fc_classifier2_forward, static_argnames=("dims",))

    out, feat = forward(x, weights_p, biases_p, dims=dims)
    out = jax.block_until_ready(out)
    feat = jax.block_until_ready(feat)

    out_ref, feat_ref = _reference_forward(x, params)
    assert out.shape == (batch, output_dim)
    assert feat.shape == (batch, layers[-1])
    assert jnp.allclose(out, out_ref, atol=5e-3, rtol=5e-3)
    assert jnp.allclose(feat, feat_ref, atol=5e-3, rtol=5e-3)

    # Also exercise the layers == [] (nn.Identity) path.
    params0 = init_fc_classifier2_params(key, input_dim, [], output_dim)
    w0, b0, dims0 = prepare_params(params0)
    out0, feat0 = forward(x, w0, b0, dims=dims0)
    out0 = jax.block_until_ready(out0)
    feat0 = jax.block_until_ready(feat0)
    out0_ref, feat0_ref = _reference_forward(x, params0)
    assert out0.shape == (batch, output_dim) and feat0.shape == (batch, input_dim)
    assert jnp.allclose(out0, out0_ref, atol=5e-3, rtol=5e-3)
    assert jnp.allclose(feat0, feat0_ref, atol=5e-3, rtol=5e-3)

    print("KERNEL_OK")
</pallas_src>

<mosaic_0001>
module attributes {stable_mosaic.version = 11 : i64} {
  func.func @_fused_mlp_kernel(%arg0: i32, %arg1: memref<8x128xf32, #tpu.memory_space<vmem>>, %arg2: memref<128x128xbf16, #tpu.memory_space<vmem>>, %arg3: memref<1x128xf32, #tpu.memory_space<vmem>>, %arg4: memref<128x128xbf16, #tpu.memory_space<vmem>>, %arg5: memref<1x128xf32, #tpu.memory_space<vmem>>, %arg6: memref<128x128xbf16, #tpu.memory_space<vmem>>, %arg7: memref<1x128xf32, #tpu.memory_space<vmem>>, %arg8: memref<8x128xf32, #tpu.memory_space<vmem>>, %arg9: memref<8x128xf32, #tpu.memory_space<vmem>>) attributes {dimension_semantics = [#tpu.dimension_semantics<parallel>], iteration_bounds = array<i64: 2>, scalar_prefetch = 0 : i64, scratch_operands = 0 : i64, tpu.core_type = #tpu.core_type<tc>, window_params = [{transform_indices = @transform_0, window_bounds = array<i64: 8, 128>}, {pipeline_mode = #tpu.pipeline_mode<synchronous>, transform_indices = @transform_1, window_bounds = array<i64: 128, 128>}, {pipeline_mode = #tpu.pipeline_mode<synchronous>, transform_indices = @transform_2, window_bounds = array<i64: 1, 128>}, {pipeline_mode = #tpu.pipeline_mode<synchronous>, transform_indices = @transform_3, window_bounds = array<i64: 128, 128>}, {pipeline_mode = #tpu.pipeline_mode<synchronous>, transform_indices = @transform_4, window_bounds = array<i64: 1, 128>}, {pipeline_mode = #tpu.pipeline_mode<synchronous>, transform_indices = @transform_5, window_bounds = array<i64: 128, 128>}, {pipeline_mode = #tpu.pipeline_mode<synchronous>, transform_indices = @transform_6, window_bounds = array<i64: 1, 128>}, {transform_indices = @transform_7, window_bounds = array<i64: 8, 128>}, {transform_indices = @transform_8, window_bounds = array<i64: 8, 128>}]} {
    %c0 = arith.constant 0 : index
    %c0_0 = arith.constant 0 : index
    %0 = vector.load %arg1[%c0, %c0_0] : memref<8x128xf32, #tpu.memory_space<vmem>>, vector<8x128xf32>
    %c0_1 = arith.constant 0 : index
    %c0_2 = arith.constant 0 : index
    %1 = vector.load %arg2[%c0_1, %c0_2] : memref<128x128xbf16, #tpu.memory_space<vmem>>, vector<128x128xbf16>
    %c0_3 = arith.constant 0 : index
    %c0_4 = arith.constant 0 : index
    %2 = vector.load %arg3[%c0_3, %c0_4] : memref<1x128xf32, #tpu.memory_space<vmem>>, vector<1x128xf32>
    %3 = arith.truncf %0 : vector<8x128xf32> to vector<8x128xbf16>
    %cst = arith.constant dense<0.000000e+00> : vector<8x128xf32>
    %4 = tpu.matmul %3, %1, %cst {dimension_numbers = #tpu.dot_dimension_numbers<[1], [0], [0], [1], [0, 0, 1, 1], [], []>} : vector<8x128xbf16>, vector<128x128xbf16>, vector<8x128xf32> -> vector<8x128xf32>
    %5 = vector.broadcast %2 : vector<1x128xf32> to vector<8x128xf32>
    %6 = arith.addf %4, %5 : vector<8x128xf32>
    %cst_5 = arith.constant 0.00999999977 : f32
    %7 = vector.broadcast %cst_5 : f32 to vector<8x128xf32>
    %8 = arith.mulf %7, %6 : vector<8x128xf32>
    %9 = arith.maximumf %6, %8 : vector<8x128xf32>
    %c0_6 = arith.constant 0 : index
    %c0_7 = arith.constant 0 : index
    %10 = vector.load %arg4[%c0_6, %c0_7] : memref<128x128xbf16, #tpu.memory_space<vmem>>, vector<128x128xbf16>
    %c0_8 = arith.constant 0 : index
    %c0_9 = arith.constant 0 : index
    %11 = vector.load %arg5[%c0_8, %c0_9] : memref<1x128xf32, #tpu.memory_space<vmem>>, vector<1x128xf32>
    %12 = arith.truncf %9 : vector<8x128xf32> to vector<8x128xbf16>
    %cst_10 = arith.constant dense<0.000000e+00> : vector<8x128xf32>
    %13 = tpu.matmul %12, %10, %cst_10 {dimension_numbers = #tpu.dot_dimension_numbers<[1], [0], [0], [1], [0, 0, 1, 1], [], []>} : vector<8x128xbf16>, vector<128x128xbf16>, vector<8x128xf32> -> vector<8x128xf32>
    %14 = vector.broadcast %11 : vector<1x128xf32> to vector<8x128xf32>
    %15 = arith.addf %13, %14 : vector<8x128xf32>
    %cst_11 = arith.constant 0.00999999977 : f32
    %16 = vector.broadcast %cst_11 : f32 to vector<8x128xf32>
    %17 = arith.mulf %16, %15 : vector<8x128xf32>
    %18 = arith.maximumf %15, %17 : vector<8x128xf32>
    %c0_12 = arith.constant 0 : index
    %c0_13 = arith.constant 0 : index
    %19 = vector.load %arg9[%c0_12, %c0_13] : memref<8x128xf32, #tpu.memory_space<vmem>>, vector<8x128xf32>
    tpu.vector_store %arg9[%c0_12, %c0_13], %18 {strides = array<i32>} : memref<8x128xf32, #tpu.memory_space<vmem>>, vector<8x128xf32>,
    %c0_14 = arith.constant 0 : index
    %c0_15 = arith.constant 0 : index
    %20 = vector.load %arg6[%c0_14, %c0_15] : memref<128x128xbf16, #tpu.memory_space<vmem>>, vector<128x128xbf16>
    %c0_16 = arith.constant 0 : index
    %c0_17 = arith.constant 0 : index
    %21 = vector.load %arg7[%c0_16, %c0_17] : memref<1x128xf32, #tpu.memory_space<vmem>>, vector<1x128xf32>
    %22 = arith.truncf %18 : vector<8x128xf32> to vector<8x128xbf16>
    %cst_18 = arith.constant dense<0.000000e+00> : vector<8x128xf32>
    %23 = tpu.matmul %22, %20, %cst_18 {dimension_numbers = #tpu.dot_dimension_numbers<[1], [0], [0], [1], [0, 0, 1, 1], [], []>} : vector<8x128xbf16>, vector<128x128xbf16>, vector<8x128xf32> -> vector<8x128xf32>
    %24 = vector.broadcast %21 : vector<1x128xf32> to vector<8x128xf32>
    %25 = arith.addf %23, %24 : vector<8x128xf32>
    %c0_19 = arith.constant 0 : index
    %c0_20 = arith.constant 0 : index
    %26 = vector.load %arg8[%c0_19, %c0_20] : memref<8x128xf32, #tpu.memory_space<vmem>>, vector<8x128xf32>
    tpu.vector_store %arg8[%c0_19, %c0_20], %25 {strides = array<i32>} : memref<8x128xf32, #tpu.memory_space<vmem>>, vector<8x128xf32>,
    return
  }
  func.func @transform_0(%arg0: i32) -> (i32, i32) {
    %c0_i32 = arith.constant 0 : i32
    %c0_i32_0 = arith.constant 0 : i32
    return %arg0, %c0_i32 : i32, i32
  }
  func.func @transform_1(%arg0: i32) -> (i32, i32) {
    %c0_i32 = arith.constant 0 : i32
    %c0_i32_0 = arith.constant 0 : i32
    %c0_i32_1 = arith.constant 0 : i32
    return %c0_i32, %c0_i32_0 : i32, i32
  }
  func.func @transform_2(%arg0: i32) -> (i32, i32) {
    %c0_i32 = arith.constant 0 : i32
    %c0_i32_0 = arith.constant 0 : i32
    %c0_i32_1 = arith.constant 0 : i32
    return %c0_i32, %c0_i32_0 : i32, i32
  }
  func.func @transform_3(%arg0: i32) -> (i32, i32) {
    %c0_i32 = arith.constant 0 : i32
    %c0_i32_0 = arith.constant 0 : i32
    %c0_i32_1 = arith.constant 0 : i32
    return %c0_i32, %c0_i32_0 : i32, i32
  }
  func.func @transform_4(%arg0: i32) -> (i32, i32) {
    %c0_i32 = arith.constant 0 : i32
    %c0_i32_0 = arith.constant 0 : i32
    %c0_i32_1 = arith.constant 0 : i32
    return %c0_i32, %c0_i32_0 : i32, i32
  }
  func.func @transform_5(%arg0: i32) -> (i32, i32) {
    %c0_i32 = arith.constant 0 : i32
    %c0_i32_0 = arith.constant 0 : i32
    %c0_i32_1 = arith.constant 0 : i32
    return %c0_i32, %c0_i32_0 : i32, i32
  }
  func.func @transform_6(%arg0: i32) -> (i32, i32) {
    %c0_i32 = arith.constant 0 : i32
    %c0_i32_0 = arith.constant 0 : i32
    %c0_i32_1 = arith.constant 0 : i32
    return %c0_i32, %c0_i32_0 : i32, i32
  }
  func.func @transform_7(%arg0: i32) -> (i32, i32) {
    %c0_i32 = arith.constant 0 : i32
    %c0_i32_0 = arith.constant 0 : i32
    return %arg0, %c0_i32 : i32, i32
  }
  func.func @transform_8(%arg0: i32) -> (i32, i32) {
    %c0_i32 = arith.constant 0 : i32
    %c0_i32_0 = arith.constant 0 : i32
    return %arg0, %c0_i32 : i32, i32
  }
}

</mosaic_0001>

<llo_original>
// kernel: fc_classifier2_forward.1
$region0: #{fc_classifier2_forward.1}
  #allocation0 [shape = 'u32[]', space=smem, size = 0x4, offset = 0x4, fixed_abs, tag = 'smem constant byte address 0x4 - core index']
  #allocation1 [shape = 'u32[144,128]{1,0:T(1,128)}', space=vmem, size = 0x12000, scoped, tag = 'internal scratch']
  %s0 = inlined_call_operand.vmem [shape: f32[16,128], index: 0, kind: input, shape index: {}]
  %s1 = inlined_call_operand.vmem [shape: bf16[128,128], index: 1, kind: input, shape index: {}]
  %s2 = inlined_call_operand.vmem [shape: f32[1,128], index: 2, kind: input, shape index: {}]
  %s3 = inlined_call_operand.hbm [shape: bf16[128,128], index: 3, kind: input, shape index: {}]
  %s4 = inlined_call_operand.vmem [shape: f32[1,128], index: 4, kind: input, shape index: {}]
  %s5 = inlined_call_operand.hbm [shape: bf16[128,128], index: 5, kind: input, shape index: {}]
  %s6 = inlined_call_operand.vmem [shape: f32[1,128], index: 6, kind: input, shape index: {}]
  %s7 = inlined_call_operand.vmem [shape: f32[16,128], index: 7, kind: output, shape index: {0}]
  %s8 = inlined_call_operand.hbm [shape: f32[16,128], index: 8, kind: output, shape index: {1}]
  %9 = xla_tuple %s7, %s8
  %s10 = sld [smem:[#allocation0]]
  $region77: #{fc_classifier2_forward.1} parent=0
    _
  %s12 = ssub.s32 1, %s10
  %s13 = scalar_select 0, %s12, %s10
  $region1: #{fc_classifier2_forward.1} parent=0
    #allocation2 [shape = 'u8[32768]{0}', space=vmem, size = 0x8000, scoped, tag = 'input window, operand 3, single buffered']
    #allocation3 [shape = 's32[2]{0}', space=sflag, size = 0x8, scoped, tag = 'scoped memory for fc_classifier2_forward.1']
    #allocation4 [shape = 's32[2]{0}', space=sflag, size = 0x8, scoped, tag = 'scoped memory for fc_classifier2_forward.1']
    #allocation5 [shape = 'u8[32768]{0}', space=vmem, size = 0x8000, scoped, tag = 'input window, operand 5, single buffered']
    #allocation6 [shape = 's32[1]{0}', space=sflag, size = 0x4, scoped, tag = 'scoped memory for fc_classifier2_forward.1']
    #allocation7 [shape = 'u8[8192]{0}', space=vmem, size = 0x2000, scoped, tag = 'output window, operand 1']
    %14 = vsyncpa [#allocation3], 0
    %15 = vsyncpa [#allocation6], 0
    %16 = vsyncpa [#allocation4], 0
    %s17 = scalar_lea.sflag [#allocation4], 1
    %18 = vsyncpa %s17, 0
    loop: start=0, step=1, limit=4
    $region2: #{fc_classifier2_forward.1} parent=1 // loop_pre_header
      _
    $region3: #{fc_classifier2_forward.1} parent=1 // loop_header
      %s20 = sphi 0, %s24
      %p21 = scmp.ge.s32.totalorder %s20, 4
      %s30 = sphi 0, %s32
      %s33 = sphi 0, %s30
      %s34 = sphi 0, %s33
      %s50 = sphi 0, %s34
      %s54 = sphi 0, %s54
      %s56 = sphi 0, %s54
      %s57 = sphi 0, %s56
      %s71 = sphi 0, %s57
      %s75 = sphi 0, %s75
      %s77 = sphi 0, %s75
      %s78 = sphi 0, %s77
      %s92 = sphi 0, %s78
      %s96 = sphi 0, %s96
      %s98 = sphi 0, %s96
      %s99 = sphi 0, %s98
      %s113 = sphi 0, %s99
      %s117 = sphi 0, %s117
      %s119 = sphi 0, %s117
      %s120 = sphi 0, %s119
      %s134 = sphi 0, %s120
      %s138 = sphi 0, %s138
      %s140 = sphi 0, %s138
      %s141 = sphi 0, %s140
      %s155 = sphi 0, %s141
      %s159 = sphi 0, %s159
      %s161 = sphi 0, %s159
      %s162 = sphi 0, %s161
      %s176 = sphi 0, %s162
      %s182 = sphi 0, %s184
      %s185 = sphi 0, %s182
      %s186 = sphi 0, %s185
      %s202 = sphi 0, %s186
      %s208 = sphi 0, %s210
      %s211 = sphi 0, %s208
      %s212 = sphi 0, %s211
      %s228 = sphi 0, %s212
    $region4: #{fc_classifier2_forward.1} parent=1 // loop_header_branch
      %23 = sbr.rel (%p21) target = $region8
    $region5: #{fc_classifier2_forward.1} parent=1 // loop_body
      %s25 = ssub.s32 %s20, 1
      %s26 = ssub.s32 %s20, 2
      %s27 = sadd.s32 %s20, 1
      %s28 = ssub.s32 %s20, %s27
      %p29 = scmp.eq.s32.totalorder %s28, 0
      %s31 = sadd.s32 %s30, 1
      %s32 = scalar_select %p29, %s30, %s31
      %p35 = pneg %p29
      %p36 = scmp.eq.s32.totalorder %s20, 1
      %p37 = por %p35, %p36
      %p38 = scmp.ne.s32.totalorder %s30, %s33
      %p39 = scmp.eq.s32.totalorder %s20, 0
      %p40 = por %p38, %p39
      %p41 = scmp.ne.s32.totalorder %s30, %s33
      %p42 = scmp.eq.s32.totalorder %s25, 1
      %p43 = por %p41, %p42
      %p44 = scmp.ne.s32.totalorder %s33, %s34
      %p45 = scmp.eq.s32.totalorder %s25, 0
      %p46 = por %p44, %p45
      %p47 = scmp.ne.s32.totalorder %s33, %s34
      %p48 = scmp.eq.s32.totalorder %s26, 1
      %p49 = por %p47, %p48
      %p51 = scmp.ne.s32.totalorder %s34, %s50
      %p52 = scmp.eq.s32.totalorder %s26, 0
      %p53 = por %p51, %p52
      %s55 = sadd.s32 %s54, 1
      %p58 = scmp.eq.s32.totalorder %s20, 1
      %p59 = scmp.ne.s32.totalorder %s54, %s56
      %p60 = scmp.eq.s32.totalorder %s20, 0
      %p61 = por %p59, %p60
      %p62 = scmp.ne.s32.totalorder %s54, %s56
      %p63 = scmp.eq.s32.totalorder %s25, 1
      %p64 = por %p62, %p63
      %p65 = scmp.ne.s32.totalorder %s56, %s57
      %p66 = scmp.eq.s32.totalorder %s25, 0
      %p67 = por %p65, %p66
      %p68 = scmp.ne.s32.totalorder %s56, %s57
      %p69 = scmp.eq.s32.totalorder %s26, 1
      %p70 = por %p68, %p69
      %p72 = scmp.ne.s32.totalorder %s57, %s71
      %p73 = scmp.eq.s32.totalorder %s26, 0
      %p74 = por %p72, %p73
      %s76 = sadd.s32 %s75, 1
      %p79 = scmp.eq.s32.totalorder %s20, 1
      %p80 = scmp.ne.s32.totalorder %s75, %s77
      %p81 = scmp.eq.s32.totalorder %s20, 0
      %p82 = por %p80, %p81
      %p83 = scmp.ne.s32.totalorder %s75, %s77
      %p84 = scmp.eq.s32.totalorder %s25, 1
      %p85 = por %p83, %p84
      %p86 = scmp.ne.s32.totalorder %s77, %s78
      %p87 = scmp.eq.s32.totalorder %s25, 0
      %p88 = por %p86, %p87
      %p89 = scmp.ne.s32.totalorder %s77, %s78
      %p90 = scmp.eq.s32.totalorder %s26, 1
      %p91 = por %p89, %p90
      %p93 = scmp.ne.s32.totalorder %s78, %s92
      %p94 = scmp.eq.s32.totalorder %s26, 0
      %p95 = por %p93, %p94
      %s97 = sadd.s32 %s96, 1
      %p100 = scmp.eq.s32.totalorder %s20, 1
      %p101 = scmp.ne.s32.totalorder %s96, %s98
      %p102 = scmp.eq.s32.totalorder %s20, 0
      %p103 = por %p101, %p102
      %p104 = scmp.ne.s32.totalorder %s96, %s98
      %p105 = scmp.eq.s32.totalorder %s25, 1
      %p106 = por %p104, %p105
      %p107 = scmp.ne.s32.totalorder %s98, %s99
      %p108 = scmp.eq.s32.totalorder %s25, 0
      %p109 = por %p107, %p108
      %p110 = scmp.ne.s32.totalorder %s98, %s99
      %p111 = scmp.eq.s32.totalorder %s26, 1
      %p112 = por %p110, %p111
      %p114 = scmp.ne.s32.totalorder %s99, %s113
      %p115 = scmp.eq.s32.totalorder %s26, 0
      %p116 = por %p114, %p115
      %s118 = sadd.s32 %s117, 1
      %p121 = scmp.eq.s32.totalorder %s20, 1
      %p122 = scmp.ne.s32.totalorder %s117, %s119
      %p123 = scmp.eq.s32.totalorder %s20, 0
      %p124 = por %p122, %p123
      %p125 = scmp.ne.s32.totalorder %s117, %s119
      %p126 = scmp.eq.s32.totalorder %s25, 1
      %p127 = por %p125, %p126
      %p128 = scmp.ne.s32.totalorder %s119, %s120
      %p129 = scmp.eq.s32.totalorder %s25, 0
      %p130 = por %p128, %p129
      %p131 = scmp.ne.s32.totalorder %s119, %s120
      %p132 = scmp.eq.s32.totalorder %s26, 1
      %p133 = por %p131, %p132
      %p135 = scmp.ne.s32.totalorder %s120, %s134
      %p136 = scmp.eq.s32.totalorder %s26, 0
      %p137 = por %p135, %p136
      %s139 = sadd.s32 %s138, 1
      %p142 = scmp.eq.s32.totalorder %s20, 1
      %p143 = scmp.ne.s32.totalorder %s138, %s140
      %p144 = scmp.eq.s32.totalorder %s20, 0
      %p145 = por %p143, %p144
      %p146 = scmp.ne.s32.totalorder %s138, %s140
      %p147 = scmp.eq.s32.totalorder %s25, 1
      %p148 = por %p146, %p147
      %p149 = scmp.ne.s32.totalorder %s140, %s141
      %p150 = scmp.eq.s32.totalorder %s25, 0
      %p151 = por %p149, %p150
      %p152 = scmp.ne.s32.totalorder %s140, %s141
      %p153 = scmp.eq.s32.totalorder %s26, 1
      %p154 = por %p152, %p153
      %p156 = scmp.ne.s32.totalorder %s141, %s155
      %p157 = scmp.eq.s32.totalorder %s26, 0
      %p158 = por %p156, %p157
      %s160 = sadd.s32 %s159, 1
      %p163 = scmp.eq.s32.totalorder %s20, 1
      %p164 = scmp.ne.s32.totalorder %s159, %s161
      %p165 = scmp.eq.s32.totalorder %s20, 0
      %p166 = por %p164, %p165
      %p167 = scmp.ne.s32.totalorder %s159, %s161
      %p168 = scmp.eq.s32.totalorder %s25, 1
      %p169 = por %p167, %p168
      %p170 = scmp.ne.s32.totalorder %s161, %s162
      %p171 = scmp.eq.s32.totalorder %s25, 0
      %p172 = por %p170, %p171
      %p173 = scmp.ne.s32.totalorder %s161, %s162
      %p174 = scmp.eq.s32.totalorder %s26, 1
      %p175 = por %p173, %p174
      %p177 = scmp.ne.s32.totalorder %s162, %s176
      %p178 = scmp.eq.s32.totalorder %s26, 0
      %p179 = por %p177, %p178
      %s180 = ssub.s32 %s20, %s27
      %p181 = scmp.eq.s32.totalorder %s180, 0
      %s183 = sadd.s32 %s182, 1
      %s184 = scalar_select %p181, %s182, %s183
      %p187 = pneg %p181
      %p188 = scmp.eq.s32.totalorder %s20, 1
      %p189 = por %p187, %p188
      %p190 = scmp.ne.s32.totalorder %s182, %s185
      %p191 = scmp.eq.s32.totalorder %s20, 0
      %p192 = por %p190, %p191
      %p193 = scmp.ne.s32.totalorder %s182, %s185
      %p194 = scmp.eq.s32.totalorder %s25, 1
      %p195 = por %p193, %p194
      %p196 = scmp.ne.s32.totalorder %s185, %s186
      %p197 = scmp.eq.s32.totalorder %s25, 0
      %p198 = por %p196, %p197
      %p199 = scmp.ne.s32.totalorder %s185, %s186
      %p200 = scmp.eq.s32.totalorder %s26, 1
      %p201 = por %p199, %p200
      %p203 = scmp.ne.s32.totalorder %s186, %s202
      %p204 = scmp.eq.s32.totalorder %s26, 0
      %p205 = por %p203, %p204
      %s206 = ssub.s32 %s20, %s27
      %p207 = scmp.eq.s32.totalorder %s206, 0
      %s209 = sadd.s32 %s208, 1
      %s210 = scalar_select %p207, %s208, %s209
      %p213 = pneg %p207
      %p214 = scmp.eq.s32.totalorder %s20, 1
      %p215 = por %p213, %p214
      %p216 = scmp.ne.s32.totalorder %s208, %s211
      %p217 = scmp.eq.s32.totalorder %s20, 0
      %p218 = por %p216, %p217
      %p219 = scmp.ne.s32.totalorder %s208, %s211
      %p220 = scmp.eq.s32.totalorder %s25, 1
      %p221 = por %p219, %p220
      %p222 = scmp.ne.s32.totalorder %s211, %s212
      %p223 = scmp.eq.s32.totalorder %s25, 0
      %p224 = por %p222, %p223
      %p225 = scmp.ne.s32.totalorder %s211, %s212
      %p226 = scmp.eq.s32.totalorder %s26, 1
      %p227 = por %p225, %p226
      %p229 = scmp.ne.s32.totalorder %s212, %s228
      %p230 = scmp.eq.s32.totalorder %s26, 0
      %p231 = por %p229, %p230
      %p232 = scmp.le.s32.totalorder 1, %s20
      %p233 = scmp.lt.s32.totalorder %s20, 3
      %p234 = pnand %p232, %p233
      %p235 = pneg %p234
      // Predicated region
      $region9: #{fc_classifier2_forward.1} parent=5 // pred_check
        _
      $region10: #{fc_classifier2_forward.1} parent=5 // pred_check_branch
        %237 = sbr.rel (%p234) target = $region12
      $region11: #{fc_classifier2_forward.1} parent=5 // pred_region
        %s238 = ssub.s32 %s20, 1
        // Predicated region
        $region13: #{fc_classifier2_forward.1} parent=11 // pred_check
          %p239 = pneg %p67
        $region14: #{fc_classifier2_forward.1} parent=11 // pred_check_branch
          %241 = sbr.rel (%p239) target = $region16
        $region15: #{fc_classifier2_forward.1} parent=11 // pred_region
          _
        $region16: #{fc_classifier2_forward.1} parent=11 // pred_fallthru
          _
        // Predicated region
        $region17: #{fc_classifier2_forward.1} parent=11 // pred_check
          %p242 = pneg %p88
        $region18: #{fc_classifier2_forward.1} parent=11 // pred_check_branch
          %244 = sbr.rel (%p242) target = $region20
        $region19: #{fc_classifier2_forward.1} parent=11 // pred_region
          _
        $region20: #{fc_classifier2_forward.1} parent=11 // pred_fallthru
          _
        // Predicated region
        $region21: #{fc_classifier2_forward.1} parent=11 // pred_check
          %p245 = pneg %p109
        $region22: #{fc_classifier2_forward.1} parent=11 // pred_check_branch
          %247 = sbr.rel (%p245) target = $region24
        $region23: #{fc_classifier2_forward.1} parent=11 // pred_region
          %s249 = ssub.s32 1024, 1024
          %250 = vsyncadd [#allocation3], %s249
          %s251 = sshll.u32 [#allocation2], 4
          %s252 = int_to_ptr.vmem [resolvable:$true] %s251
          %257 = dma.hbm_to_vmem [thread:$0]  %s3, 1024, %s252, [#allocation3], 64, 64, 4
        $region24: #{fc_classifier2_forward.1} parent=11 // pred_fallthru
          _
        // Predicated region
        $region25: #{fc_classifier2_forward.1} parent=11 // pred_check
          %p258 = pneg %p130
        $region26: #{fc_classifier2_forward.1} parent=11 // pred_check_branch
          %260 = sbr.rel (%p258) target = $region28
        $region27: #{fc_classifier2_forward.1} parent=11 // pred_region
          _
        $region28: #{fc_classifier2_forward.1} parent=11 // pred_fallthru
          _
        // Predicated region
        $region29: #{fc_classifier2_forward.1} parent=11 // pred_check
          %p261 = pneg %p151
        $region30: #{fc_classifier2_forward.1} parent=11 // pred_check_branch
          %263 = sbr.rel (%p261) target = $region32
        $region31: #{fc_classifier2_forward.1} parent=11 // pred_region
          %s265 = ssub.s32 1024, 1024
          %266 = vsyncadd [#allocation6], %s265
          %s267 = sshll.u32 [#allocation5], 4
          %s268 = int_to_ptr.vmem [resolvable:$true] %s267
          %273 = dma.hbm_to_vmem [thread:$0]  %s5, 1024, %s268, [#allocation6], 64, 64, 4
        $region32: #{fc_classifier2_forward.1} parent=11 // pred_fallthru
          _
        // Predicated region
        $region33: #{fc_classifier2_forward.1} parent=11 // pred_check
          %p274 = pneg %p172
        $region34: #{fc_classifier2_forward.1} parent=11 // pred_check_branch
          %276 = sbr.rel (%p274) target = $region36
        $region35: #{fc_classifier2_forward.1} parent=11 // pred_region
          _
        $region36: #{fc_classifier2_forward.1} parent=11 // pred_fallthru
          _
      $region12: #{fc_classifier2_forward.1} parent=5 // pred_fallthru
        _
      %p277 = scmp.lt.s32.totalorder %s20, 2
      // Predicated region
      $region37: #{fc_classifier2_forward.1} parent=5 // pred_check
        %p278 = pneg %p277
      $region38: #{fc_classifier2_forward.1} parent=5 // pred_check_branch
        %280 = sbr.rel (%p278) target = $region40
      $region39: #{fc_classifier2_forward.1} parent=5 // pred_region
        // Predicated region
        $region41: #{fc_classifier2_forward.1} parent=39 // pred_check
          %p281 = pneg %p40
        $region42: #{fc_classifier2_forward.1} parent=39 // pred_check_branch
          %283 = sbr.rel (%p281) target = $region44
        $region43: #{fc_classifier2_forward.1} parent=39 // pred_region
          %p284 = scmp.lt.s32.totalorder %s20, 1
          %s285 = scalar_select %p284, %s20, 1
          %s286 = smul.addr %s285, 8
          %s287 = scalar_lea.vmem %s0, %s286
        $region44: #{fc_classifier2_forward.1} parent=39 // pred_fallthru
          _
      $region40: #{fc_classifier2_forward.1} parent=5 // pred_fallthru
        _
      %p288 = scmp.le.s32.totalorder 1, %s20
      %p289 = scmp.lt.s32.totalorder %s20, 3
      %p290 = pnand %p288, %p289
      %p291 = pneg %p290
      // Predicated region
      $region45: #{fc_classifier2_forward.1} parent=5 // pred_check
        _
      $region46: #{fc_classifier2_forward.1} parent=5 // pred_check_branch
        %293 = sbr.rel (%p290) target = $region48
      $region47: #{fc_classifier2_forward.1} parent=5 // pred_region
        %s294 = ssub.s32 %s20, 1
        // Predicated region
        $region49: #{fc_classifier2_forward.1} parent=47 // pred_check
          %p295 = pneg %p109
        $region50: #{fc_classifier2_forward.1} parent=47 // pred_check_branch
          %297 = sbr.rel (%p295) target = $region52
        $region51: #{fc_classifier2_forward.1} parent=47 // pred_region
          %298 = dma.done [#allocation3], 1024
        $region52: #{fc_classifier2_forward.1} parent=47 // pred_fallthru
          _
        // Predicated region
        $region53: #{fc_classifier2_forward.1} parent=47 // pred_check
          %p299 = pneg %p151
        $region54: #{fc_classifier2_forward.1} parent=47 // pred_check_branch
          %301 = sbr.rel (%p299) target = $region56
        $region55: #{fc_classifier2_forward.1} parent=47 // pred_region
          %302 = dma.done [#allocation6], 1024
        $region56: #{fc_classifier2_forward.1} parent=47 // pred_fallthru
          _
        %p303 = scmp.lt.s32.totalorder %s25, 1
        %s304 = scalar_select %p303, %s25, 1
        %s305 = smul.addr %s304, 8
        %s306 = scalar_lea.vmem %s0, %s305
        %p307 = pneg %p46
        %p308 = pneg %p43
        %p309 = pneg %p67
        %p310 = pneg %p64
        %p311 = pneg %p88
        %p312 = pneg %p85
        %p313 = pneg %p109
        %p314 = pneg %p106
        %p315 = pneg %p130
        %p316 = pneg %p127
        %p317 = pneg %p151
        %p318 = pneg %p148
        %p319 = pneg %p172
        %p320 = pneg %p169
        %p321 = pneg %p198
        %p322 = pneg %p195
        %p323 = scmp.lt.s32.totalorder %s25, 1
        %s324 = scalar_select %p323, %s25, 1
        %s325 = smul.addr %s324, 8
        %s326 = scalar_lea.vmem %s7, %s325
        %p327 = pneg %p224
        %p328 = pneg %p221
        %s329 = sand.u32 %s211, 1
        %s330 = scalar_lea.sflag [#allocation4], %s329
        %s331 = sand.u32 %s211, 1
        %s332 = smul.addr %s331, 8
        %s333 = scalar_lea.vmem [#allocation7], %s332
        %p334 = scmp.lt.s32.totalorder %s25, 1
        %s335 = scalar_select %p334, %s25, 1
        %s336 = smul.addr %s335, 8
        %s337 = scalar_lea.vmem %s0, %s336
        %p338 = scmp.lt.s32.totalorder %s25, 1
        %s339 = scalar_select %p338, %s25, 1
        %s340 = smul.addr %s339, 8
        %s341 = scalar_lea.vmem %s7, %s340
        %v343 = vld [vmem:[%s337] sm:$0xff]
        %v344 = vld [vmem:[%s1] sm:$0xf]
        %v345 = vld [vmem:[%s1 + $0x4] sm:$0xf]
        %v346 = vld [vmem:[%s1 + $0x8] sm:$0xf]
        %v347 = vld [vmem:[%s1 + $0xc] sm:$0xf]
        %v348 = vld [vmem:[%s1 + $0x10] sm:$0xf]
        %v349 = vld [vmem:[%s1 + $0x14] sm:$0xf]
        %v350 = vld [vmem:[%s1 + $0x18] sm:$0xf]
        %v351 = vld [vmem:[%s1 + $0x1c] sm:$0xf]
        %v352 = vld [vmem:[%s1 + $0x20] sm:$0xf]
        %v353 = vld [vmem:[%s1 + $0x24] sm:$0xf]
        %v354 = vld [vmem:[%s1 + $0x28] sm:$0xf]
        %v355 = vld [vmem:[%s1 + $0x2c] sm:$0xf]
        %v356 = vld [vmem:[%s1 + $0x30] sm:$0xf]
        %v357 = vld [vmem:[%s1 + $0x34] sm:$0xf]
        %v358 = vld [vmem:[%s1 + $0x38] sm:$0xf]
        %v359 = vld [vmem:[%s1 + $0x3c] sm:$0xf]
        %v360 = vld [vmem:[%s2] sm:$0x1]
        %v361 = vpack.c.bf16 %v343, %v343
        %v363 = vlaneseq
        %v364 = vshrl.u32 %v363, 7
        %v365 = vsub.s32 0, %v364
        %v366 = vrot.slane %v360, %v365
        %v384 = vunpack.c.l.b16 %v344
        %v385 = vunpack.c.l.b16 %v345
        %v386 = vunpack.c.l.b16 %v346
        %v387 = vunpack.c.l.b16 %v347
        %v388 = vunpack.c.l.b16 %v348
        %v389 = vunpack.c.l.b16 %v349
        %v390 = vunpack.c.l.b16 %v350
        %v391 = vunpack.c.l.b16 %v351
        %v392 = vunpack.c.l.b16 %v352
        %v393 = vunpack.c.l.b16 %v353
        %v394 = vunpack.c.l.b16 %v354
        %v395 = vunpack.c.l.b16 %v355
        %v396 = vunpack.c.l.b16 %v356
        %v397 = vunpack.c.l.b16 %v357
        %v398 = vunpack.c.l.b16 %v358
        %v399 = vunpack.c.l.b16 %v359
        %v400 = vpack.c.b16 %v385, %v384
        %v401 = vpack.c.b16 %v387, %v386
        %v402 = vpack.c.b16 %v389, %v388
        %v403 = vpack.c.b16 %v391, %v390
        %v404 = vpack.c.b16 %v393, %v392
        %v405 = vpack.c.b16 %v395, %v394
        %v406 = vpack.c.b16 %v397, %v396
        %v407 = vpack.c.b16 %v399, %v398
        %416 = vmatprep.subr.bf16.mxu0 0
        %417 = vmatpush1.bf16.msra.mxu0 %v400
        %418 = vmatprep.subr.bf16.mxu0 0
        %419 = vmatpush1.bf16.msra.mxu0 %v401
        %420 = vmatprep.subr.bf16.mxu0 0
        %421 = vmatpush1.bf16.msra.mxu0 %v402
        %422 = vmatprep.subr.bf16.mxu0 0
        %423 = vmatpush1.bf16.msra.mxu0 %v403
        %424 = vmatprep.subr.bf16.mxu0 0
        %425 = vmatpush1.bf16.msra.mxu0 %v404
        %426 = vmatprep.subr.bf16.mxu0 0
        %427 = vmatpush1.bf16.msra.mxu0 %v405
        %428 = vmatprep.subr.bf16.mxu0 0
        %429 = vmatpush1.bf16.msra.mxu0 %v406
        %430 = vmatprep.subr.bf16.mxu0 0
        %431 = vmatpush1.bf16.msra.mxu0 %v407
        %432 = vmatprep.subr.bf16.mxu0 0
        %433 = vmatpush1.bf16.msra.mxu0 0
        %434 = vmatprep.subr.bf16.mxu0 0
        %435 = vmatpush1.bf16.msra.mxu0 0
        %436 = vmatprep.subr.bf16.mxu0 0
        %437 = vmatpush1.bf16.msra.mxu0 0
        %438 = vmatprep.subr.bf16.mxu0 0
        %439 = vmatpush1.bf16.msra.mxu0 0
        %440 = vmatprep.subr.bf16.mxu0 0
        %441 = vmatpush1.bf16.msra.mxu0 0
        %442 = vmatprep.subr.bf16.mxu0 0
        %443 = vmatpush1.bf16.msra.mxu0 0
        %444 = vmatprep.subr.bf16.mxu0 0
        %445 = vmatpush1.bf16.msra.mxu0 0
        %446 = vmatprep.subr.bf16.mxu0 0
        %447 = vmatpush1.bf16.msra.mxu0 0
        %448 = vmatprep.mubr.bf16.mxu0 0
        %449 = vmatmul.mubr.bf16.gmra.mrb[0].mxu0 %v361
        %v450 = vpop.f32.mrb[0].mxu0
        %v451 = vadd.f32 %v366, %v450
        %v452 = vpop.f32.mrb[0].mxu0
        %v453 = vpop.f32.mrb[0].mxu0
        %v454 = vpop.f32.mrb[0].mxu0
        %455 = vdwg.mxu0
        %v456 = vmul.f32 %v451, 0.01
        %v457 = vmax.f32 %v451, %v456
        %v458 = vld [vmem:[#allocation2] sm:$0xf]
        %v459 = vld [vmem:[#allocation2 + $0x4] sm:$0xf]
        %v460 = vld [vmem:[#allocation2 + $0x8] sm:$0xf]
        %v461 = vld [vmem:[#allocation2 + $0xc] sm:$0xf]
        %v462 = vld [vmem:[#allocation2 + $0x10] sm:$0xf]
        %v463 = vld [vmem:[#allocation2 + $0x14] sm:$0xf]
        %v464 = vld [vmem:[#allocation2 + $0x18] sm:$0xf]
        %v465 = vld [vmem:[#allocation2 + $0x1c] sm:$0xf]
        %v466 = vld [vmem:[#allocation2 + $0x20] sm:$0xf]
        %v467 = vld [vmem:[#allocation2 + $0x24] sm:$0xf]
        %v468 = vld [vmem:[#allocation2 + $0x28] sm:$0xf]
        %v469 = vld [vmem:[#allocation2 + $0x2c] sm:$0xf]
        %v470 = vld [vmem:[#allocation2 + $0x30] sm:$0xf]
        %v471 = vld [vmem:[#allocation2 + $0x34] sm:$0xf]
        %v472 = vld [vmem:[#allocation2 + $0x38] sm:$0xf]
        %v473 = vld [vmem:[#allocation2 + $0x3c] sm:$0xf]
        %v474 = vld [vmem:[%s4] sm:$0x1]
        %v475 = vpack.c.bf16 %v457, %v457
        %v477 = vlaneseq
        %v478 = vshrl.u32 %v477, 7
        %v479 = vsub.s32 0, %v478
        %v480 = vrot.slane %v474, %v479
        %v498 = vunpack.c.l.b16 %v458
        %v499 = vunpack.c.l.b16 %v459
        %v500 = vunpack.c.l.b16 %v460
        %v501 = vunpack.c.l.b16 %v461
        %v502 = vunpack.c.l.b16 %v462
        %v503 = vunpack.c.l.b16 %v463
        %v504 = vunpack.c.l.b16 %v464
        %v505 = vunpack.c.l.b16 %v465
        %v506 = vunpack.c.l.b16 %v466
        %v507 = vunpack.c.l.b16 %v467
        %v508 = vunpack.c.l.b16 %v468
        %v509 = vunpack.c.l.b16 %v469
        %v510 = vunpack.c.l.b16 %v470
        %v511 = vunpack.c.l.b16 %v471
        %v512 = vunpack.c.l.b16 %v472
        %v513 = vunpack.c.l.b16 %v473
        %v514 = vpack.c.b16 %v499, %v498
        %v515 = vpack.c.b16 %v501, %v500
        %v516 = vpack.c.b16 %v503, %v502
        %v517 = vpack.c.b16 %v505, %v504
        %v518 = vpack.c.b16 %v507, %v506
        %v519 = vpack.c.b16 %v509, %v508
        %v520 = vpack.c.b16 %v511, %v510
        %v521 = vpack.c.b16 %v513, %v512
        %530 = vmatprep.subr.bf16.mxu0 0
        %531 = vmatpush1.bf16.msra.mxu0 %v514
        %532 = vmatprep.subr.bf16.mxu0 0
        %533 = vmatpush1.bf16.msra.mxu0 %v515
        %534 = vmatprep.subr.bf16.mxu0 0
        %535 = vmatpush1.bf16.msra.mxu0 %v516
        %536 = vmatprep.subr.bf16.mxu0 0
        %537 = vmatpush1.bf16.msra.mxu0 %v517
        %538 = vmatprep.subr.bf16.mxu0 0
        %539 = vmatpush1.bf16.msra.mxu0 %v518
        %540 = vmatprep.subr.bf16.mxu0 0
        %541 = vmatpush1.bf16.msra.mxu0 %v519
        %542 = vmatprep.subr.bf16.mxu0 0
        %543 = vmatpush1.bf16.msra.mxu0 %v520
        %544 = vmatprep.subr.bf16.mxu0 0
        %545 = vmatpush1.bf16.msra.mxu0 %v521
        %546 = vmatprep.subr.bf16.mxu0 0
        %547 = vmatpush1.bf16.msra.mxu0 0
        %548 = vmatprep.subr.bf16.mxu0 0
        %549 = vmatpush1.bf16.msra.mxu0 0
        %550 = vmatprep.subr.bf16.mxu0 0
        %551 = vmatpush1.bf16.msra.mxu0 0
        %552 = vmatprep.subr.bf16.mxu0 0
        %553 = vmatpush1.bf16.msra.mxu0 0
        %554 = vmatprep.subr.bf16.mxu0 0
        %555 = vmatpush1.bf16.msra.mxu0 0
        %556 = vmatprep.subr.bf16.mxu0 0
        %557 = vmatpush1.bf16.msra.mxu0 0
        %558 = vmatprep.subr.bf16.mxu0 0
        %559 = vmatpush1.bf16.msra.mxu0 0
        %560 = vmatprep.subr.bf16.mxu0 0
        %561 = vmatpush1.bf16.msra.mxu0 0
        %562 = vmatprep.mubr.bf16.mxu0 0
        %563 = vmatmul.mubr.bf16.gmra.mrb[0].mxu0 %v475
        %v564 = vpop.f32.mrb[0].mxu0
        %v565 = vadd.f32 %v480, %v564
        %v566 = vpop.f32.mrb[0].mxu0
        %v567 = vpop.f32.mrb[0].mxu0
        %v568 = vpop.f32.mrb[0].mxu0
        %569 = vdwg.mxu0
        %v570 = vmul.f32 %v565, 0.01
        %v571 = vmax.f32 %v565, %v570
        %572 = vst [vmem:[%s333] sm:$0xff] %v571
        %v573 = vld [vmem:[#allocation5] sm:$0xf]
        %v574 = vld [vmem:[#allocation5 + $0x4] sm:$0xf]
        %v575 = vld [vmem:[#allocation5 + $0x8] sm:$0xf]
        %v576 = vld [vmem:[#allocation5 + $0xc] sm:$0xf]
        %v577 = vld [vmem:[#allocation5 + $0x10] sm:$0xf]
        %v578 = vld [vmem:[#allocation5 + $0x14] sm:$0xf]
        %v579 = vld [vmem:[#allocation5 + $0x18] sm:$0xf]
        %v580 = vld [vmem:[#allocation5 + $0x1c] sm:$0xf]
        %v581 = vld [vmem:[#allocation5 + $0x20] sm:$0xf]
        %v582 = vld [vmem:[#allocation5 + $0x24] sm:$0xf]
        %v583 = vld [vmem:[#allocation5 + $0x28] sm:$0xf]
        %v584 = vld [vmem:[#allocation5 + $0x2c] sm:$0xf]
        %v585 = vld [vmem:[#allocation5 + $0x30] sm:$0xf]
        %v586 = vld [vmem:[#allocation5 + $0x34] sm:$0xf]
        %v587 = vld [vmem:[#allocation5 + $0x38] sm:$0xf]
        %v588 = vld [vmem:[#allocation5 + $0x3c] sm:$0xf]
        %v589 = vld [vmem:[%s6] sm:$0x1]
        %v590 = vpack.c.bf16 %v571, %v571
        %v592 = vlaneseq
        %v593 = vshrl.u32 %v592, 7
        %v594 = vsub.s32 0, %v593
        %v595 = vrot.slane %v589, %v594
        %v613 = vunpack.c.l.b16 %v573
        %v614 = vunpack.c.l.b16 %v574
        %v615 = vunpack.c.l.b16 %v575
        %v616 = vunpack.c.l.b16 %v576
        %v617 = vunpack.c.l.b16 %v577
        %v618 = vunpack.c.l.b16 %v578
        %v619 = vunpack.c.l.b16 %v579
        %v620 = vunpack.c.l.b16 %v580
        %v621 = vunpack.c.l.b16 %v581
        %v622 = vunpack.c.l.b16 %v582
        %v623 = vunpack.c.l.b16 %v583
        %v624 = vunpack.c.l.b16 %v584
        %v625 = vunpack.c.l.b16 %v585
        %v626 = vunpack.c.l.b16 %v586
        %v627 = vunpack.c.l.b16 %v587
        %v628 = vunpack.c.l.b16 %v588
        %v629 = vpack.c.b16 %v614, %v613
        %v630 = vpack.c.b16 %v616, %v615
        %v631 = vpack.c.b16 %v618, %v617
        %v632 = vpack.c.b16 %v620, %v619
        %v633 = vpack.c.b16 %v622, %v621
        %v634 = vpack.c.b16 %v624, %v623
        %v635 = vpack.c.b16 %v626, %v625
        %v636 = vpack.c.b16 %v628, %v627
        %645 = vmatprep.subr.bf16.mxu0 0
        %646 = vmatpush1.bf16.msra.mxu0 %v629
        %647 = vmatprep.subr.bf16.mxu0 0
        %648 = vmatpush1.bf16.msra.mxu0 %v630
        %649 = vmatprep.subr.bf16.mxu0 0
        %650 = vmatpush1.bf16.msra.mxu0 %v631
        %651 = vmatprep.subr.bf16.mxu0 0
        %652 = vmatpush1.bf16.msra.mxu0 %v632
        %653 = vmatprep.subr.bf16.mxu0 0
        %654 = vmatpush1.bf16.msra.mxu0 %v633
        %655 = vmatprep.subr.bf16.mxu0 0
        %656 = vmatpush1.bf16.msra.mxu0 %v634
        %657 = vmatprep.subr.bf16.mxu0 0
        %658 = vmatpush1.bf16.msra.mxu0 %v635
        %659 = vmatprep.subr.bf16.mxu0 0
        %660 = vmatpush1.bf16.msra.mxu0 %v636
        %661 = vmatprep.subr.bf16.mxu0 0
        %662 = vmatpush1.bf16.msra.mxu0 0
        %663 = vmatprep.subr.bf16.mxu0 0
        %664 = vmatpush1.bf16.msra.mxu0 0
        %665 = vmatprep.subr.bf16.mxu0 0
        %666 = vmatpush1.bf16.msra.mxu0 0
        %667 = vmatprep.subr.bf16.mxu0 0
        %668 = vmatpush1.bf16.msra.mxu0 0
        %669 = vmatprep.subr.bf16.mxu0 0
        %670 = vmatpush1.bf16.msra.mxu0 0
        %671 = vmatprep.subr.bf16.mxu0 0
        %672 = vmatpush1.bf16.msra.mxu0 0
        %673 = vmatprep.subr.bf16.mxu0 0
        %674 = vmatpush1.bf16.msra.mxu0 0
        %675 = vmatprep.subr.bf16.mxu0 0
        %676 = vmatpush1.bf16.msra.mxu0 0
        %677 = vmatprep.mubr.bf16.mxu0 0
        %678 = vmatmul.mubr.bf16.gmra.mrb[0].mxu0 %v590
        %v679 = vpop.f32.mrb[0].mxu0
        %v680 = vadd.f32 %v595, %v679
        %v681 = vpop.f32.mrb[0].mxu0
        %v682 = vpop.f32.mrb[0].mxu0
        %v683 = vpop.f32.mrb[0].mxu0
        %684 = vdwg.mxu0
        %685 = vst [vmem:[%s341] sm:$0xff] %v680
        %p686 = scmp.lt.s32.totalorder %s25, 1
        %s687 = scalar_select %p686, %s25, 1
        %s688 = smul.addr %s687, 8
        %s689 = scalar_lea.vmem %s7, %s688
        %s690 = sand.u32 %s211, 1
        %s691 = scalar_lea.sflag [#allocation4], %s690
        %s692 = sand.u32 %s211, 1
        %s693 = smul.addr %s692, 8
        %s694 = scalar_lea.vmem [#allocation7], %s693
        // Predicated region
        $region57: #{fc_classifier2_forward.1} parent=47 // pred_check
          %p695 = pneg %p195
        $region58: #{fc_classifier2_forward.1} parent=47 // pred_check_branch
          %697 = sbr.rel (%p695) target = $region60
        $region59: #{fc_classifier2_forward.1} parent=47 // pred_region
          _
        $region60: #{fc_classifier2_forward.1} parent=47 // pred_fallthru
          _
        // Predicated region
        $region61: #{fc_classifier2_forward.1} parent=47 // pred_check
          %p698 = pneg %p221
        $region62: #{fc_classifier2_forward.1} parent=47 // pred_check_branch
          %700 = sbr.rel (%p698) target = $region64
        $region63: #{fc_classifier2_forward.1} parent=47 // pred_region
          %s702 = ssub.s32 128, 128
          %703 = vsyncadd %s691, %s702
          %s704 = smul.addr %s25, 128
          %s705 = scalar_lea.hbm %s8, %s704
          %s707 = sshll.u32 %s694, 4
          %s708 = int_to_ptr.vmem [resolvable:$true] %s707
          %710 = dma.vmem_to_hbm [thread:$0]  %s708, 128, %s705, %s691
        $region64: #{fc_classifier2_forward.1} parent=47 // pred_fallthru
          _
      $region48: #{fc_classifier2_forward.1} parent=5 // pred_fallthru
        _
      %p711 = scmp.le.s32.totalorder 2, %s20
      // Predicated region
      $region65: #{fc_classifier2_forward.1} parent=5 // pred_check
        %p712 = pneg %p711
      $region66: #{fc_classifier2_forward.1} parent=5 // pred_check_branch
        %714 = sbr.rel (%p712) target = $region68
      $region67: #{fc_classifier2_forward.1} parent=5 // pred_region
        %s715 = ssub.s32 %s20, 2
        // Predicated region
        $region69: #{fc_classifier2_forward.1} parent=67 // pred_check
          %p716 = pneg %p201
        $region70: #{fc_classifier2_forward.1} parent=67 // pred_check_branch
          %718 = sbr.rel (%p716) target = $region72
        $region71: #{fc_classifier2_forward.1} parent=67 // pred_region
          %p719 = scmp.lt.s32.totalorder %s26, 1
          %s720 = scalar_select %p719, %s26, 1
          %s721 = smul.addr %s720, 8
          %s722 = scalar_lea.vmem %s7, %s721
        $region72: #{fc_classifier2_forward.1} parent=67 // pred_fallthru
          _
        // Predicated region
        $region73: #{fc_classifier2_forward.1} parent=67 // pred_check
          %p723 = pneg %p227
        $region74: #{fc_classifier2_forward.1} parent=67 // pred_check_branch
          %725 = sbr.rel (%p723) target = $region76
        $region75: #{fc_classifier2_forward.1} parent=67 // pred_region
          %s726 = sand.u32 %s212, 1
          %s727 = scalar_lea.sflag [#allocation4], %s726
          %s728 = sand.u32 %s212, 1
          %s729 = smul.addr %s728, 8
          %s730 = scalar_lea.vmem [#allocation7], %s729
          %731 = dma.done %s727, 128
        $region76: #{fc_classifier2_forward.1} parent=67 // pred_fallthru
          _
      $region68: #{fc_classifier2_forward.1} parent=5 // pred_fallthru
        _
    $region6: #{fc_classifier2_forward.1} parent=1 // loop_footer
      %s24 = sadd.s32 1, %s20
    $region7: #{fc_classifier2_forward.1} parent=1 // loop_footer_branch
      %19 = sbr.rel target = $region3
    $region8: #{fc_classifier2_forward.1} parent=1 // loop_exit
      _
    %732 = vsyncpa [#allocation3], 1
    %s733 = scalar_lea.sflag [#allocation3], 1
    %734 = vsyncpa %s733, 1
    %735 = vsyncpa [#allocation6], 1
    %736 = vsyncpa [#allocation4], 1
    %s737 = scalar_lea.sflag [#allocation4], 1
    %738 = vsyncpa %s737, 1

</llo_original>
